<compile_context>
chip_gen: v6e
topology: v6e:2x2x1
jax: 0.10.0
libtpu: 0.0.40
codegen_flags: <defaults>
</compile_context>

<pallas_src>
import functools

import jax
import jax.numpy as jnp
from jax.experimental import pallas as pl
from jax.experimental.pallas import tpu as pltpu


# ----------------------------- kernel ---------------------------------------


def _cnn_kernel(x_ref, lh_ref, rh_ref, w_ref, b_ref, m_ref, o_ref,
                win_ref, lhs_ref, *, kernel_size, pad, halo_off, l_tile, bt,
                compute_dtype):
    # x_ref  : (bt, L_tile, C_in)           current tiles (auto-pipelined)
    # lh_ref : (bt, 1, halo_rows, C_in)     left-halo rows  (compute dtype)
    # rh_ref : (bt, 1, halo_rows, C_in)     right-halo rows (compute dtype)
    # w_ref  : (K*C_in, C_out)              folded conv weights (compute dtype)
    # b_ref  : (1, C_out)                   bias (f32)
    # m_ref  : (bt, L_tile, 1)              mask (f32)
    # o_ref  : (bt, L_tile, C_out)          output tiles
    # win_ref: (bt, 2*halo_off + L_tile, C_in)  haloed windows (compute dtype)
    # lhs_ref: (bt*L_tile, K*C_in)          im2col LHS (compute dtype)
    c_in = x_ref.shape[2]
    K = kernel_size

    for b in range(bt):                               # static unroll, bt small
        # Assemble the haloed window; the single f32->bf16 cast happens here.
        win_ref[b, halo_off:halo_off + l_tile, :] = x_ref[b].astype(compute_dtype)
        if pad > 0:
            win_ref[b, halo_off - pad:halo_off, :] = lh_ref[b, 0]
            win_ref[b, halo_off + l_tile:halo_off + l_tile + pad, :] = rh_ref[b, 0]

        # im2col: tap k occupies lanes [k*C_in, (k+1)*C_in).
        base = b * l_tile
        for k in range(K):
            off = halo_off - pad + k
            lhs_ref[base:base + l_tile, k * c_in:(k + 1) * c_in] = \
                win_ref[b, off:off + l_tile, :]

    # Single MXU matmul, contraction depth K*C_in, f32 accumulation.
    acc = jnp.dot(lhs_ref[...], w_ref[...], preferred_element_type=jnp.float32)
    acc = jnp.maximum(acc + b_ref[...], 0.0)          # bias + ReLU (f32 epilogue)

    for b in range(bt):                               # mask + store per row
        row = acc[b * l_tile:(b + 1) * l_tile, :] * m_ref[b]
        o_ref[b] = row.astype(o_ref.dtype)


# ----------------------------- wrapper helpers -------------------------------


def _round_up(x, m):
    return ((x + m - 1) // m) * m


def _cdiv(a, b):
    return -(-a // b)


def _vmem_capacity_bytes():
    try:
        info = pltpu.get_tpu_info()
        cap = getattr(info, "vmem_capacity_bytes", None)
        if cap:
            return int(cap)
    except Exception:
        pass
    return 64 * 1024 * 1024        # conservative (v7x) fallback


def _pick_l_tile(seq_len, pad, max_tile):
    cands = [t for t in (2048, 1024, 512, 256, 128, 64, 32, 16, 8) if t <= max_tile]
    if not cands:
        cands = [8]
    for t in cands:                                   # prefer exact divisors
        if seq_len % t == 0 and t >= pad:
            return t
    for t in cands:                                   # else pad L up to a multiple
        if t <= seq_len and t >= pad:
            return t
    return max(8, _round_up(max(pad, 1), 8))


def _pick_bt(batch, n_t, per_step_row_bytes, target_bytes=2 * 1024 * 1024):
    bt = 1
    for cand in range(1, batch + 1):
        if batch % cand == 0 and cand * per_step_row_bytes <= target_bytes:
            bt = cand
    # Keep at least 2 grid steps when possible (v7x: 2 TensorCores).
    if n_t == 1 and batch >= 2 and bt > batch // 2:
        bt = max(d for d in range(1, batch) if batch % d == 0 and d <= batch // 2)
    return bt


# ----------------------------- public wrapper --------------------------------


def cnn_intermediate_layer(embedded_sequence, mask, weight, bias, kernel_size=3,
                           compute_dtype=jnp.bfloat16, out_dtype=None,
                           l_tile=None, bt=None):
    """embedded_sequence: (B, L, C_in), mask: (B, L),
    weight: (C_out, C_in, K) [PyTorch Conv1d layout], bias: (C_out,)."""
    assert kernel_size % 2 == 1, "padding='same' emulated for odd kernel sizes"
    B, L, c_in = embedded_sequence.shape
    c_out = weight.shape[0]
    K = kernel_size
    pad = (K - 1) // 2
    in_dtype = embedded_sequence.dtype
    out_dtype = in_dtype if out_dtype is None else jnp.dtype(out_dtype)

    esz_in = jnp.dtype(in_dtype).itemsize
    esz_out = jnp.dtype(out_dtype).itemsize
    cdt_sz = jnp.dtype(compute_dtype).itemsize

    # ---- generation-aware tile ceiling --------------------------------------
    vmem_cap = _vmem_capacity_bytes()
    if vmem_cap >= 96 * 1024 * 1024:        # v5e / v6e (128 MiB physical)
        max_tile = 2048
    elif vmem_cap >= 48 * 1024 * 1024:
        max_tile = 1024
    else:                                   # v7x (64 MiB physical)
        max_tile = 512
    per_l_bytes = (c_in * esz_in + c_out * esz_out + 4
                   + K * c_in * cdt_sz + c_in * cdt_sz)
    max_tile = min(max_tile,
                   max(8, ((4 * 1024 * 1024) // per_l_bytes) // 8 * 8))
    if B == 1 and L >= 16:                  # keep >= 2 grid steps for v7x 2 TCs
        max_tile = min(max_tile, _round_up(_cdiv(L, 2), 8))

    if l_tile is None:
        l_tile = _pick_l_tile(L, pad, max_tile)
    assert l_tile % 8 == 0 and l_tile >= pad

    n_t = _cdiv(L, l_tile)
    L_pad = n_t * l_tile
    halo_off = max(16, _round_up(pad, 16))  # 16-aligned for bf16 sublane packing
    halo_rows = max(pad, 1)

    # ---- batch folding -------------------------------------------------------
    per_step_row_bytes = l_tile * (c_in * esz_in + c_out * esz_out + 4
                                   + K * c_in * cdt_sz)
    if bt is None:
        bt = _pick_bt(B, n_t, per_step_row_bytes)
    assert B % bt == 0

    # ---- wrapper-side glue (tiny / one-time; x is read once in the kernel) ---
    x_p = embedded_sequence
    mask_p = mask
    if L_pad != L:
        x_p = jnp.pad(x_p, ((0, 0), (0, L_pad - L), (0, 0)))
        mask_p = jnp.pad(mask_p, ((0, 0), (0, L_pad - L)))

    w = jnp.transpose(weight, (2, 1, 0)).reshape(K * c_in, c_out) \
           .astype(compute_dtype)                                   # (K*C_in, C_out)
    b = bias.astype(jnp.float32).reshape(1, c_out)                  # (1, C_out)
    m = mask_p.astype(jnp.float32).reshape(B, L_pad, 1)             # (B, L_pad, 1)

    if pad > 0 and n_t > 1:
        xt = x_p.reshape(B, n_t, l_tile, c_in)
        z = jnp.zeros((B, 1, pad, c_in), dtype=in_dtype)
        lh = jnp.concatenate([z, xt[:, :-1, l_tile - pad:, :]], axis=1) \
                .astype(compute_dtype)
        rh = jnp.concatenate([xt[:, 1:, :pad, :], z], axis=1).astype(compute_dtype)
    else:
        lh = jnp.zeros((B, n_t, halo_rows, c_in), dtype=compute_dtype)
        rh = jnp.zeros((B, n_t, halo_rows, c_in), dtype=compute_dtype)

    # ---- VMEM budget: generation-aware ceiling, never below the footprint ----
    rows = 2 * halo_off + l_tile
    vmem_est = (2 * bt * l_tile * c_in * esz_in            # x tiles (dbl-buffered)
                + 2 * bt * l_tile * c_out * esz_out        # out tiles
                + 2 * bt * l_tile * 4                      # mask tiles
                + 4 * bt * halo_rows * c_in * cdt_sz       # halos
                + 2 * (K * c_in * c_out * cdt_sz + c_out * 4)   # weights + bias
                + bt * rows * c_in * cdt_sz                # window scratch
                + bt * l_tile * K * c_in * cdt_sz          # im2col scratch
                + 2 * bt * l_tile * c_out * 4)             # f32 accumulator slack
    vmem_ceiling = min(vmem_cap * 3 // 4, 100 * 1024 * 1024)
    vmem_limit = max(16 * 1024 * 1024, min(4 * vmem_est, vmem_ceiling))
    vmem_limit = max(vmem_limit, vmem_est + vmem_est // 4 + 2 * 1024 * 1024)
    vmem_limit = int(min(vmem_limit, vmem_cap))

    kernel = functools.partial(_cnn_kernel, kernel_size=K, pad=pad,
                               halo_off=halo_off, l_tile=l_tile, bt=bt,
                               compute_dtype=compute_dtype)

    out = pl.pallas_call(
        kernel,
        out_shape=jax.ShapeDtypeStruct((B, L_pad, c_out), out_dtype),
        grid_spec=pltpu.PrefetchScalarGridSpec(
            num_scalar_prefetch=0,
            grid=(B // bt, n_t),
            in_specs=[
                pl.BlockSpec((bt, l_tile, c_in), lambda bi, li: (bi, li, 0)),
                pl.BlockSpec((bt, 1, halo_rows, c_in),
                             lambda bi, li: (bi, li, 0, 0)),
                pl.BlockSpec((bt, 1, halo_rows, c_in),
                             lambda bi, li: (bi, li, 0, 0)),
                pl.BlockSpec((K * c_in, c_out), lambda bi, li: (0, 0)),
                pl.BlockSpec((1, c_out), lambda bi, li: (0, 0)),
                pl.BlockSpec((bt, l_tile, 1), lambda bi, li: (bi, li, 0)),
            ],
            out_specs=pl.BlockSpec((bt, l_tile, c_out), lambda bi, li: (bi, li, 0)),
            scratch_shapes=[
                pltpu.VMEM((bt, 2 * halo_off + l_tile, c_in), compute_dtype),
                pltpu.VMEM((bt * l_tile, K * c_in), compute_dtype),
            ],
        ),
        compiler_params=pltpu.CompilerParams(
            dimension_semantics=("parallel", "parallel"),
            vmem_limit_bytes=vmem_limit,
        ),
    )(x_p, lh, rh, w, b, m)

    if L_pad != L:
        out = out[:, :L, :]
    return out


# ----------------------------- reference & tests -----------------------------


def _reference(embedded_sequence, mask, weight, bias, kernel_size=3):
    """Pure-JAX f32 reference of the PyTorch forward."""
    pad = (kernel_size - 1) // 2
    xp = jnp.pad(embedded_sequence, ((0, 0), (pad, pad), (0, 0)))
    L = embedded_sequence.shape[1]
    out = jnp.zeros((embedded_sequence.shape[0], L, weight.shape[0]), jnp.float32)
    for k in range(kernel_size):
        out = out + jnp.einsum("bli,oi->blo", xp[:, k:k + L, :], weight[:, :, k],
                               preferred_element_type=jnp.float32)
    out = jnp.maximum(out + bias[None, None, :], 0.0)
    return out * mask[..., None].astype(out.dtype)


if __name__ == "__main__":
    B, L, C_IN, C_OUT, K = 2, 16, 32, 32, 3

    key = jax.random.PRNGKey(0)
    k_x, k_m, k_w, k_b, k_x2, k_m2, k_x3, k_m3 = jax.random.split(key, 8)

    bound = 1.0 / (C_IN * K) ** 0.5
    weight = jax.random.uniform(k_w, (C_OUT, C_IN, K), minval=-bound, maxval=bound)
    bias = jax.random.uniform(k_b, (C_OUT,), minval=-bound, maxval=bound)

    def check(out, xx, mm):
        ref_f32 = _reference(xx, mm, weight, bias, kernel_size=K)
        x_r = xx.astype(jnp.bfloat16).astype(jnp.float32)
        w_r = weight.astype(jnp.bfloat16).astype(jnp.float32)
        ref_bf16 = _reference(x_r, mm, w_r, bias, kernel_size=K)
        assert out.shape == ref_f32.shape
        assert jnp.allclose(out, ref_bf16, atol=1e-3, rtol=1e-3), "mismatch (bf16 ref)"
        assert jnp.allclose(out, ref_f32, atol=5e-2, rtol=5e-2), "mismatch (f32 ref)"

    # Test 1: single sequence tile per batch element (toy shapes).
    x = jax.random.normal(k_x, (B, L, C_IN), dtype=jnp.float32)
    mask = (jax.random.uniform(k_m, (B, L)) > 0.3).astype(jnp.float32)
    out = jax.block_until_ready(
        cnn_intermediate_layer(x, mask, weight, bias, kernel_size=K))
    check(out, x, mask)

    # Test 2: multi-tile sequence axis with batch folding (bt=2) -> exercises
    # the in-kernel halo path, the im2col fold and the batched grid step.
    L2 = 64
    x2 = jax.random.normal(k_x2, (B, L2, C_IN), dtype=jnp.float32)
    mask2 = (jax.random.uniform(k_m2, (B, L2)) > 0.3).astype(jnp.float32)
    out2 = jax.block_until_ready(
        cnn_intermediate_layer(x2, mask2, weight, bias, kernel_size=K, l_tile=16))
    check(out2, x2, mask2)

    # Test 3: non-divisible sequence length -> exercises the L-padding path.
    L3 = 20
    x3 = jax.random.normal(k_x3, (B, L3, C_IN), dtype=jnp.float32)
    mask3 = (jax.random.uniform(k_m3, (B, L3)) > 0.3).astype(jnp.float32)
    out3 = jax.block_until_ready(
        cnn_intermediate_layer(x3, mask3, weight, bias, kernel_size=K))
    check(out3, x3, mask3)

    print("KERNEL_OK")
</pallas_src>

<mosaic_0001>
module attributes {stable_mosaic.version = 11 : i64} {
  func.func @_cnn_kernel(%arg0: i32, %arg1: i32, %arg2: memref<1x16x32xf32, #tpu.memory_space<vmem>>, %arg3: memref<1x1x1x32xbf16, #tpu.memory_space<vmem>>, %arg4: memref<1x1x1x32xbf16, #tpu.memory_space<vmem>>, %arg5: memref<96x32xbf16, #tpu.memory_space<vmem>>, %arg6: memref<1x32xf32, #tpu.memory_space<vmem>>, %arg7: memref<1x16x1xf32, #tpu.memory_space<vmem>>, %arg8: memref<1x16x32xf32, #tpu.memory_space<vmem>>, %arg9: memref<1x48x32xbf16, #tpu.memory_space<vmem>>, %arg10: memref<16x96xbf16, #tpu.memory_space<vmem>>) attributes {dimension_semantics = [#tpu.dimension_semantics<parallel>, #tpu.dimension_semantics<parallel>], iteration_bounds = array<i64: 2, 1>, scalar_prefetch = 0 : i64, scratch_operands = 2 : i64, tpu.core_type = #tpu.core_type<tc>, window_params = [{transform_indices = @transform_0, window_bounds = array<i64: 1, 16, 32>}, {transform_indices = @transform_1, window_bounds = array<i64: 1, 1, 1, 32>}, {transform_indices = @transform_2, window_bounds = array<i64: 1, 1, 1, 32>}, {pipeline_mode = #tpu.pipeline_mode<synchronous>, transform_indices = @transform_3, window_bounds = array<i64: 96, 32>}, {pipeline_mode = #tpu.pipeline_mode<synchronous>, transform_indices = @transform_4, window_bounds = array<i64: 1, 32>}, {transform_indices = @transform_5, window_bounds = array<i64: 1, 16, 1>}, {transform_indices = @transform_6, window_bounds = array<i64: 1, 16, 32>}]} {
    %c0 = arith.constant 0 : index
    %c0_0 = arith.constant 0 : index
    %c0_1 = arith.constant 0 : index
    %0 = vector.load %arg2[%c0, %c0_0, %c0_1] : memref<1x16x32xf32, #tpu.memory_space<vmem>>, vector<1x16x32xf32>
    %1 = vector.shape_cast %0 : vector<1x16x32xf32> to vector<16x32xf32>
    %2 = arith.truncf %1 : vector<16x32xf32> to vector<16x32xbf16>
    %c0_2 = arith.constant 0 : index
    %c16 = arith.constant 16 : index
    %c0_3 = arith.constant 0 : index
    %3 = vector.load %arg9[%c0_2, %c16, %c0_3] : memref<1x48x32xbf16, #tpu.memory_space<vmem>>, vector<1x16x32xbf16>
    %4 = vector.shape_cast %3 : vector<1x16x32xbf16> to vector<16x32xbf16>
    %5 = vector.shape_cast %2 : vector<16x32xbf16> to vector<1x16x32xbf16>
    tpu.vector_store %arg9[%c0_2, %c16, %c0_3], %5 {strides = array<i32>} : memref<1x48x32xbf16, #tpu.memory_space<vmem>>, vector<1x16x32xbf16>,
    %c0_4 = arith.constant 0 : index
    %c0_5 = arith.constant 0 : index
    %c0_6 = arith.constant 0 : index
    %c0_7 = arith.constant 0 : index
    %6 = vector.load %arg3[%c0_4, %c0_5, %c0_6, %c0_7] : memref<1x1x1x32xbf16, #tpu.memory_space<vmem>>, vector<1x1x1x32xbf16>
    %7 = vector.shape_cast %6 : vector<1x1x1x32xbf16> to vector<1x32xbf16>
    %c0_8 = arith.constant 0 : index
    %c15 = arith.constant 15 : index
    %c0_9 = arith.constant 0 : index
    %8 = vector.load %arg9[%c0_8, %c15, %c0_9] : memref<1x48x32xbf16, #tpu.memory_space<vmem>>, vector<1x1x32xbf16>
    %9 = vector.shape_cast %8 : vector<1x1x32xbf16> to vector<1x32xbf16>
    %10 = vector.shape_cast %7 : vector<1x32xbf16> to vector<1x1x32xbf16>
    tpu.vector_store %arg9[%c0_8, %c15, %c0_9], %10 {strides = array<i32>} : memref<1x48x32xbf16, #tpu.memory_space<vmem>>, vector<1x1x32xbf16>,
    %c0_10 = arith.constant 0 : index
    %c0_11 = arith.constant 0 : index
    %c0_12 = arith.constant 0 : index
    %c0_13 = arith.constant 0 : index
    %11 = vector.load %arg4[%c0_10, %c0_11, %c0_12, %c0_13] : memref<1x1x1x32xbf16, #tpu.memory_space<vmem>>, vector<1x1x1x32xbf16>
    %12 = vector.shape_cast %11 : vector<1x1x1x32xbf16> to vector<1x32xbf16>
    %c0_14 = arith.constant 0 : index
    %c32 = arith.constant 32 : index
    %c0_15 = arith.constant 0 : index
    %13 = vector.load %arg9[%c0_14, %c32, %c0_15] : memref<1x48x32xbf16, #tpu.memory_space<vmem>>, vector<1x1x32xbf16>
    %14 = vector.shape_cast %13 : vector<1x1x32xbf16> to vector<1x32xbf16>
    %15 = vector.shape_cast %12 : vector<1x32xbf16> to vector<1x1x32xbf16>
    tpu.vector_store %arg9[%c0_14, %c32, %c0_15], %15 {strides = array<i32>} : memref<1x48x32xbf16, #tpu.memory_space<vmem>>, vector<1x1x32xbf16>,
    %c0_16 = arith.constant 0 : index
    %c15_17 = arith.constant 15 : index
    %c0_18 = arith.constant 0 : index
    %16 = vector.load %arg9[%c0_16, %c15_17, %c0_18] : memref<1x48x32xbf16, #tpu.memory_space<vmem>>, vector<1x16x32xbf16>
    %17 = vector.shape_cast %16 : vector<1x16x32xbf16> to vector<16x32xbf16>
    %c0_19 = arith.constant 0 : index
    %c0_20 = arith.constant 0 : index
    %18 = vector.load %arg10[%c0_19, %c0_20] : memref<16x96xbf16, #tpu.memory_space<vmem>>, vector<16x32xbf16>
    tpu.vector_store %arg10[%c0_19, %c0_20], %17 {strides = array<i32>} : memref<16x96xbf16, #tpu.memory_space<vmem>>, vector<16x32xbf16>,
    %c0_21 = arith.constant 0 : index
    %c16_22 = arith.constant 16 : index
    %c0_23 = arith.constant 0 : index
    %19 = vector.load %arg9[%c0_21, %c16_22, %c0_23] : memref<1x48x32xbf16, #tpu.memory_space<vmem>>, vector<1x16x32xbf16>
    %20 = vector.shape_cast %19 : vector<1x16x32xbf16> to vector<16x32xbf16>
    %c0_24 = arith.constant 0 : index
    %c32_25 = arith.constant 32 : index
    %21 = vector.load %arg10[%c0_24, %c32_25] : memref<16x96xbf16, #tpu.memory_space<vmem>>, vector<16x32xbf16>
    tpu.vector_store %arg10[%c0_24, %c32_25], %20 {strides = array<i32>} : memref<16x96xbf16, #tpu.memory_space<vmem>>, vector<16x32xbf16>,
    %c0_26 = arith.constant 0 : index
    %c17 = arith.constant 17 : index
    %c0_27 = arith.constant 0 : index
    %22 = vector.load %arg9[%c0_26, %c17, %c0_27] : memref<1x48x32xbf16, #tpu.memory_space<vmem>>, vector<1x16x32xbf16>
    %23 = vector.shape_cast %22 : vector<1x16x32xbf16> to vector<16x32xbf16>
    %c0_28 = arith.constant 0 : index
    %c64 = arith.constant 64 : index
    %24 = vector.load %arg10[%c0_28, %c64] : memref<16x96xbf16, #tpu.memory_space<vmem>>, vector<16x32xbf16>
    tpu.vector_store %arg10[%c0_28, %c64], %23 {strides = array<i32>} : memref<16x96xbf16, #tpu.memory_space<vmem>>, vector<16x32xbf16>,
    %c0_29 = arith.constant 0 : index
    %c0_30 = arith.constant 0 : index
    %25 = vector.load %arg10[%c0_29, %c0_30] : memref<16x96xbf16, #tpu.memory_space<vmem>>, vector<16x96xbf16>
    %c0_31 = arith.constant 0 : index
    %c0_32 = arith.constant 0 : index
    %26 = vector.load %arg5[%c0_31, %c0_32] : memref<96x32xbf16, #tpu.memory_space<vmem>>, vector<96x32xbf16>
    %cst = arith.constant dense<0.000000e+00> : vector<16x32xf32>
    %27 = tpu.matmul %25, %26, %cst {dimension_numbers = #tpu.dot_dimension_numbers<[1], [0], [0], [1], [0, 0, 1, 1], [], []>} : vector<16x96xbf16>, vector<96x32xbf16>, vector<16x32xf32> -> vector<16x32xf32>
    %c0_33 = arith.constant 0 : index
    %c0_34 = arith.constant 0 : index
    %28 = vector.load %arg6[%c0_33, %c0_34] : memref<1x32xf32, #tpu.memory_space<vmem>>, vector<1x32xf32>
    %29 = vector.broadcast %28 : vector<1x32xf32> to vector<16x32xf32>
    %30 = arith.addf %27, %29 : vector<16x32xf32>
    %cst_35 = arith.constant 0.000000e+00 : f32
    %31 = vector.broadcast %cst_35 : f32 to vector<16x32xf32>
    %32 = arith.maximumf %30, %31 : vector<16x32xf32>
    %c0_36 = arith.constant 0 : index
    %c0_37 = arith.constant 0 : index
    %c0_38 = arith.constant 0 : index
    %33 = vector.load %arg7[%c0_36, %c0_37, %c0_38] : memref<1x16x1xf32, #tpu.memory_space<vmem>>, vector<1x16x1xf32>
    %34 = vector.shape_cast %33 : vector<1x16x1xf32> to vector<16x1xf32>
    %35 = vector.broadcast %34 : vector<16x1xf32> to vector<16x32xf32>
    %36 = arith.mulf %32, %35 : vector<16x32xf32>
    %c0_39 = arith.constant 0 : index
    %c0_40 = arith.constant 0 : index
    %c0_41 = arith.constant 0 : index
    %37 = vector.load %arg8[%c0_39, %c0_40, %c0_41] : memref<1x16x32xf32, #tpu.memory_space<vmem>>, vector<1x16x32xf32>
    %38 = vector.shape_cast %37 : vector<1x16x32xf32> to vector<16x32xf32>
    %39 = vector.shape_cast %36 : vector<16x32xf32> to vector<1x16x32xf32>
    tpu.vector_store %arg8[%c0_39, %c0_40, %c0_41], %39 {strides = array<i32>} : memref<1x16x32xf32, #tpu.memory_space<vmem>>, vector<1x16x32xf32>,
    return
  }
  func.func @transform_0(%arg0: i32, %arg1: i32) -> (i32, i32, i32) {
    %c0_i32 = arith.constant 0 : i32
    %c0_i32_0 = arith.constant 0 : i32
    return %arg0, %arg1, %c0_i32 : i32, i32, i32
  }
  func.func @transform_1(%arg0: i32, %arg1: i32) -> (i32, i32, i32, i32) {
    %c0_i32 = arith.constant 0 : i32
    %c0_i32_0 = arith.constant 0 : i32
    %c0_i32_1 = arith.constant 0 : i32
    return %arg0, %arg1, %c0_i32, %c0_i32_0 : i32, i32, i32, i32
  }
  func.func @transform_2(%arg0: i32, %arg1: i32) -> (i32, i32, i32, i32) {
    %c0_i32 = arith.constant 0 : i32
    %c0_i32_0 = arith.constant 0 : i32
    %c0_i32_1 = arith.constant 0 : i32
    return %arg0, %arg1, %c0_i32, %c0_i32_0 : i32, i32, i32, i32
  }
  func.func @transform_3(%arg0: i32, %arg1: i32) -> (i32, i32) {
    %c0_i32 = arith.constant 0 : i32
    %c0_i32_0 = arith.constant 0 : i32
    %c0_i32_1 = arith.constant 0 : i32
    return %c0_i32, %c0_i32_0 : i32, i32
  }
  func.func @transform_4(%arg0: i32, %arg1: i32) -> (i32, i32) {
    %c0_i32 = arith.constant 0 : i32
    %c0_i32_0 = arith.constant 0 : i32
    %c0_i32_1 = arith.constant 0 : i32
    return %c0_i32, %c0_i32_0 : i32, i32
  }
  func.func @transform_5(%arg0: i32, %arg1: i32) -> (i32, i32, i32) {
    %c0_i32 = arith.constant 0 : i32
    %c0_i32_0 = arith.constant 0 : i32
    return %arg0, %arg1, %c0_i32 : i32, i32, i32
  }
  func.func @transform_6(%arg0: i32, %arg1: i32) -> (i32, i32, i32) {
    %c0_i32 = arith.constant 0 : i32
    %c0_i32_0 = arith.constant 0 : i32
    return %arg0, %arg1, %c0_i32 : i32, i32, i32
  }
}

</mosaic_0001>

<llo_original>
// kernel: tpu_custom_call.1
$region0: #{tpu_custom_call.1}
  #allocation0 [shape = 'u32[]', space=smem, size = 0x4, offset = 0x4, fixed_abs, tag = 'smem constant byte address 0x4 - core index']
  #allocation1 [shape = 'u32[144,128]{1,0:T(1,128)}', space=vmem, size = 0x12000, scoped, tag = 'internal scratch']
  #allocation2 [shape = 'bf16[1,48,32]{2,1,0:T(8,128)(2,1)}', space=vmem, size = 0x3000, scoped, tag = 'scratch operand']
  #allocation3 [shape = 'bf16[16,96]{1,0:T(8,128)(2,1)}', space=vmem, size = 0x1000, scoped, tag = 'scratch operand']
  %s0 = inlined_call_operand.vmem [shape: f32[2,16,32], index: 0, kind: input, shape index: {}]
  %s1 = inlined_call_operand.vmem [shape: bf16[2,1,1,32], index: 1, kind: input, shape index: {}]
  %s2 = inlined_call_operand.vmem [shape: bf16[2,1,1,32], index: 2, kind: input, shape index: {}]
  %s3 = inlined_call_operand.vmem [shape: bf16[96,32], index: 3, kind: input, shape index: {}]
  %s4 = inlined_call_operand.vmem [shape: f32[1,32], index: 4, kind: input, shape index: {}]
  %s5 = inlined_call_operand.vmem [shape: f32[2,16,1], index: 5, kind: input, shape index: {}]
  %s6 = inlined_call_operand.hbm [shape: f32[2,16,32], index: 6, kind: output, shape index: {}]
  %s7 = sld [smem:[#allocation0]]
  $region57: #{tpu_custom_call.1} parent=0
    _
  %s9 = ssub.s32 1, %s7
  %s10 = scalar_select 0, %s9, %s7
  $region1: #{tpu_custom_call.1} parent=0
    #allocation4 [shape = 'u8[16384]{0}', space=vmem, size = 0x4000, scoped, tag = 'output window, operand 0']
    #allocation5 [shape = 's32[2]{0}', space=sflag, size = 0x8, scoped, tag = 'scoped memory for tpu_custom_call.1']
    %11 = vsyncpa [#allocation5], 0
    %s12 = scalar_lea.sflag [#allocation5], 1
    %13 = vsyncpa %s12, 0
    loop: start=0, step=1, limit=4
    $region2: #{tpu_custom_call.1} parent=1 // loop_pre_header
      _
    $region3: #{tpu_custom_call.1} parent=1 // loop_header
      %s15 = sphi 0, %s19
      %p16 = scmp.ge.s32.totalorder %s15, 4
      %s22 = sphi 0, %s34
      %s23 = sphi 0, %s30
      %s24 = sphi 0, %s22
      %s25 = sphi 0, %s23
      %s26 = sphi 0, %s24
      %s27 = sphi 0, %s25
      %s39 = sphi 0, %s41
      %s42 = sphi 0, %s39
      %s43 = sphi 0, %s42
      %s59 = sphi 0, %s43
      %s67 = sphi 0, %s69
      %s70 = sphi 0, %s67
      %s71 = sphi 0, %s70
      %s87 = sphi 0, %s71
      %s95 = sphi 0, %s97
      %s98 = sphi 0, %s95
      %s99 = sphi 0, %s98
      %s115 = sphi 0, %s99
      %s119 = sphi 0, %s119
      %s121 = sphi 0, %s119
      %s122 = sphi 0, %s121
      %s136 = sphi 0, %s122
      %s140 = sphi 0, %s140
      %s142 = sphi 0, %s140
      %s143 = sphi 0, %s142
      %s157 = sphi 0, %s143
      %s165 = sphi 0, %s167
      %s168 = sphi 0, %s165
      %s169 = sphi 0, %s168
      %s185 = sphi 0, %s169
      %s193 = sphi 0, %s195
      %s196 = sphi 0, %s193
      %s197 = sphi 0, %s196
      %s213 = sphi 0, %s197
    $region4: #{tpu_custom_call.1} parent=1 // loop_header_branch
      %18 = sbr.rel (%p16) target = $region8
    $region5: #{tpu_custom_call.1} parent=1 // loop_body
      %s20 = ssub.s32 %s15, 1
      %s21 = ssub.s32 %s15, 2
      %s28 = sadd.s32 1, %s23
      %p29 = scmp.ge.s32.totalorder %s28, 1
      %s30 = scalar_select %p29, 0, %s28
      %s31 = sadd.s32 1, %s22
      %s32 = scalar_select %p29, %s31, %s22
      %p33 = scmp.ge.s32.totalorder %s32, 2
      %s34 = scalar_select %p33, 0, %s32
      %s35 = ssub.s32 %s22, %s34
      %s36 = ssub.s32 %s23, %s30
      %s37 = sor.u32 %s35, %s36
      %p38 = scmp.eq.s32.totalorder %s37, 0
      %s40 = sadd.s32 %s39, 1
      %s41 = scalar_select %p38, %s39, %s40
      %p44 = pneg %p38
      %p45 = scmp.eq.s32.totalorder %s15, 1
      %p46 = por %p44, %p45
      %p47 = scmp.ne.s32.totalorder %s39, %s42
      %p48 = scmp.eq.s32.totalorder %s15, 0
      %p49 = por %p47, %p48
      %p50 = scmp.ne.s32.totalorder %s39, %s42
      %p51 = scmp.eq.s32.totalorder %s20, 1
      %p52 = por %p50, %p51
      %p53 = scmp.ne.s32.totalorder %s42, %s43
      %p54 = scmp.eq.s32.totalorder %s20, 0
      %p55 = por %p53, %p54
      %p56 = scmp.ne.s32.totalorder %s42, %s43
      %p57 = scmp.eq.s32.totalorder %s21, 1
      %p58 = por %p56, %p57
      %p60 = scmp.ne.s32.totalorder %s43, %s59
      %p61 = scmp.eq.s32.totalorder %s21, 0
      %p62 = por %p60, %p61
      %s63 = ssub.s32 %s22, %s34
      %s64 = ssub.s32 %s23, %s30
      %s65 = sor.u32 %s63, %s64
      %p66 = scmp.eq.s32.totalorder %s65, 0
      %s68 = sadd.s32 %s67, 1
      %s69 = scalar_select %p66, %s67, %s68
      %p72 = pneg %p66
      %p73 = scmp.eq.s32.totalorder %s15, 1
      %p74 = por %p72, %p73
      %p75 = scmp.ne.s32.totalorder %s67, %s70
      %p76 = scmp.eq.s32.totalorder %s15, 0
      %p77 = por %p75, %p76
      %p78 = scmp.ne.s32.totalorder %s67, %s70
      %p79 = scmp.eq.s32.totalorder %s20, 1
      %p80 = por %p78, %p79
      %p81 = scmp.ne.s32.totalorder %s70, %s71
      %p82 = scmp.eq.s32.totalorder %s20, 0
      %p83 = por %p81, %p82
      %p84 = scmp.ne.s32.totalorder %s70, %s71
      %p85 = scmp.eq.s32.totalorder %s21, 1
      %p86 = por %p84, %p85
      %p88 = scmp.ne.s32.totalorder %s71, %s87
      %p89 = scmp.eq.s32.totalorder %s21, 0
      %p90 = por %p88, %p89
      %s91 = ssub.s32 %s22, %s34
      %s92 = ssub.s32 %s23, %s30
      %s93 = sor.u32 %s91, %s92
      %p94 = scmp.eq.s32.totalorder %s93, 0
      %s96 = sadd.s32 %s95, 1
      %s97 = scalar_select %p94, %s95, %s96
      %p100 = pneg %p94
      %p101 = scmp.eq.s32.totalorder %s15, 1
      %p102 = por %p100, %p101
      %p103 = scmp.ne.s32.totalorder %s95, %s98
      %p104 = scmp.eq.s32.totalorder %s15, 0
      %p105 = por %p103, %p104
      %p106 = scmp.ne.s32.totalorder %s95, %s98
      %p107 = scmp.eq.s32.totalorder %s20, 1
      %p108 = por %p106, %p107
      %p109 = scmp.ne.s32.totalorder %s98, %s99
      %p110 = scmp.eq.s32.totalorder %s20, 0
      %p111 = por %p109, %p110
      %p112 = scmp.ne.s32.totalorder %s98, %s99
      %p113 = scmp.eq.s32.totalorder %s21, 1
      %p114 = por %p112, %p113
      %p116 = scmp.ne.s32.totalorder %s99, %s115
      %p117 = scmp.eq.s32.totalorder %s21, 0
      %p118 = por %p116, %p117
      %s120 = sadd.s32 %s119, 1
      %p123 = scmp.eq.s32.totalorder %s15, 1
      %p124 = scmp.ne.s32.totalorder %s119, %s121
      %p125 = scmp.eq.s32.totalorder %s15, 0
      %p126 = por %p124, %p125
      %p127 = scmp.ne.s32.totalorder %s119, %s121
      %p128 = scmp.eq.s32.totalorder %s20, 1
      %p129 = por %p127, %p128
      %p130 = scmp.ne.s32.totalorder %s121, %s122
      %p131 = scmp.eq.s32.totalorder %s20, 0
      %p132 = por %p130, %p131
      %p133 = scmp.ne.s32.totalorder %s121, %s122
      %p134 = scmp.eq.s32.totalorder %s21, 1
      %p135 = por %p133, %p134
      %p137 = scmp.ne.s32.totalorder %s122, %s136
      %p138 = scmp.eq.s32.totalorder %s21, 0
      %p139 = por %p137, %p138
      %s141 = sadd.s32 %s140, 1
      %p144 = scmp.eq.s32.totalorder %s15, 1
      %p145 = scmp.ne.s32.totalorder %s140, %s142
      %p146 = scmp.eq.s32.totalorder %s15, 0
      %p147 = por %p145, %p146
      %p148 = scmp.ne.s32.totalorder %s140, %s142
      %p149 = scmp.eq.s32.totalorder %s20, 1
      %p150 = por %p148, %p149
      %p151 = scmp.ne.s32.totalorder %s142, %s143
      %p152 = scmp.eq.s32.totalorder %s20, 0
      %p153 = por %p151, %p152
      %p154 = scmp.ne.s32.totalorder %s142, %s143
      %p155 = scmp.eq.s32.totalorder %s21, 1
      %p156 = por %p154, %p155
      %p158 = scmp.ne.s32.totalorder %s143, %s157
      %p159 = scmp.eq.s32.totalorder %s21, 0
      %p160 = por %p158, %p159
      %s161 = ssub.s32 %s22, %s34
      %s162 = ssub.s32 %s23, %s30
      %s163 = sor.u32 %s161, %s162
      %p164 = scmp.eq.s32.totalorder %s163, 0
      %s166 = sadd.s32 %s165, 1
      %s167 = scalar_select %p164, %s165, %s166
      %p170 = pneg %p164
      %p171 = scmp.eq.s32.totalorder %s15, 1
      %p172 = por %p170, %p171
      %p173 = scmp.ne.s32.totalorder %s165, %s168
      %p174 = scmp.eq.s32.totalorder %s15, 0
      %p175 = por %p173, %p174
      %p176 = scmp.ne.s32.totalorder %s165, %s168
      %p177 = scmp.eq.s32.totalorder %s20, 1
      %p178 = por %p176, %p177
      %p179 = scmp.ne.s32.totalorder %s168, %s169
      %p180 = scmp.eq.s32.totalorder %s20, 0
      %p181 = por %p179, %p180
      %p182 = scmp.ne.s32.totalorder %s168, %s169
      %p183 = scmp.eq.s32.totalorder %s21, 1
      %p184 = por %p182, %p183
      %p186 = scmp.ne.s32.totalorder %s169, %s185
      %p187 = scmp.eq.s32.totalorder %s21, 0
      %p188 = por %p186, %p187
      %s189 = ssub.s32 %s22, %s34
      %s190 = ssub.s32 %s23, %s30
      %s191 = sor.u32 %s189, %s190
      %p192 = scmp.eq.s32.totalorder %s191, 0
      %s194 = sadd.s32 %s193, 1
      %s195 = scalar_select %p192, %s193, %s194
      %p198 = pneg %p192
      %p199 = scmp.eq.s32.totalorder %s15, 1
      %p200 = por %p198, %p199
      %p201 = scmp.ne.s32.totalorder %s193, %s196
      %p202 = scmp.eq.s32.totalorder %s15, 0
      %p203 = por %p201, %p202
      %p204 = scmp.ne.s32.totalorder %s193, %s196
      %p205 = scmp.eq.s32.totalorder %s20, 1
      %p206 = por %p204, %p205
      %p207 = scmp.ne.s32.totalorder %s196, %s197
      %p208 = scmp.eq.s32.totalorder %s20, 0
      %p209 = por %p207, %p208
      %p210 = scmp.ne.s32.totalorder %s196, %s197
      %p211 = scmp.eq.s32.totalorder %s21, 1
      %p212 = por %p210, %p211
      %p214 = scmp.ne.s32.totalorder %s197, %s213
      %p215 = scmp.eq.s32.totalorder %s21, 0
      %p216 = por %p214, %p215
      %p217 = scmp.le.s32.totalorder 1, %s15
      %p218 = scmp.lt.s32.totalorder %s15, 3
      %p219 = pnand %p217, %p218
      %p220 = pneg %p219
      // Predicated region
      $region9: #{tpu_custom_call.1} parent=5 // pred_check
        _
      $region10: #{tpu_custom_call.1} parent=5 // pred_check_branch
        %222 = sbr.rel (%p219) target = $region12
      $region11: #{tpu_custom_call.1} parent=5 // pred_region
        %s223 = ssub.s32 %s15, 1
        // Predicated region
        $region13: #{tpu_custom_call.1} parent=11 // pred_check
          %p224 = pneg %p132
        $region14: #{tpu_custom_call.1} parent=11 // pred_check_branch
          %226 = sbr.rel (%p224) target = $region16
        $region15: #{tpu_custom_call.1} parent=11 // pred_region
          _
        $region16: #{tpu_custom_call.1} parent=11 // pred_fallthru
          _
        // Predicated region
        $region17: #{tpu_custom_call.1} parent=11 // pred_check
          %p227 = pneg %p153
        $region18: #{tpu_custom_call.1} parent=11 // pred_check_branch
          %229 = sbr.rel (%p227) target = $region20
        $region19: #{tpu_custom_call.1} parent=11 // pred_region
          _
        $region20: #{tpu_custom_call.1} parent=11 // pred_fallthru
          _
      $region12: #{tpu_custom_call.1} parent=5 // pred_fallthru
        _
      %p230 = scmp.lt.s32.totalorder %s15, 2
      // Predicated region
      $region21: #{tpu_custom_call.1} parent=5 // pred_check
        %p231 = pneg %p230
      $region22: #{tpu_custom_call.1} parent=5 // pred_check_branch
        %233 = sbr.rel (%p231) target = $region24
      $region23: #{tpu_custom_call.1} parent=5 // pred_region
        // Predicated region
        $region25: #{tpu_custom_call.1} parent=23 // pred_check
          %p234 = pneg %p49
        $region26: #{tpu_custom_call.1} parent=23 // pred_check_branch
          %236 = sbr.rel (%p234) target = $region28
        $region27: #{tpu_custom_call.1} parent=23 // pred_region
          %s237 = smul.u32 2, %s23
          %p238 = scmp.lt.s32.totalorder %s22, 1
          %s239 = scalar_select %p238, %s22, 1
          %p240 = scmp.lt.s32.totalorder %s237, 1
          %s241 = scalar_select %p240, %s237, 1
          %s242 = smul.addr %s239, 2
          %s243 = sadd.s32 %s241, %s242
          %s244 = smul.addr %s243, 8
          %s245 = scalar_lea.vmem %s0, %s244
          %s246 = smul.u32 2, %s23
        $region28: #{tpu_custom_call.1} parent=23 // pred_fallthru
          _
        // Predicated region
        $region29: #{tpu_custom_call.1} parent=23 // pred_check
          %p247 = pneg %p77
        $region30: #{tpu_custom_call.1} parent=23 // pred_check_branch
          %249 = sbr.rel (%p247) target = $region32
        $region31: #{tpu_custom_call.1} parent=23 // pred_region
          %p250 = scmp.lt.s32.totalorder %s22, 1
          %s251 = scalar_select %p250, %s22, 1
          %p252 = scmp.lt.s32.totalorder %s23, 0
          %s253 = scalar_select %p252, %s23, 0
          %s254 = sadd.s32 %s253, %s251
          %s255 = scalar_lea.vmem %s1, %s254
        $region32: #{tpu_custom_call.1} parent=23 // pred_fallthru
          _
        // Predicated region
        $region33: #{tpu_custom_call.1} parent=23 // pred_check
          %p256 = pneg %p105
        $region34: #{tpu_custom_call.1} parent=23 // pred_check_branch
          %258 = sbr.rel (%p256) target = $region36
        $region35: #{tpu_custom_call.1} parent=23 // pred_region
          %p259 = scmp.lt.s32.totalorder %s22, 1
          %s260 = scalar_select %p259, %s22, 1
          %p261 = scmp.lt.s32.totalorder %s23, 0
          %s262 = scalar_select %p261, %s23, 0
          %s263 = sadd.s32 %s262, %s260
          %s264 = scalar_lea.vmem %s2, %s263
        $region36: #{tpu_custom_call.1} parent=23 // pred_fallthru
          _
        // Predicated region
        $region37: #{tpu_custom_call.1} parent=23 // pred_check
          %p265 = pneg %p175
        $region38: #{tpu_custom_call.1} parent=23 // pred_check_branch
          %267 = sbr.rel (%p265) target = $region40
        $region39: #{tpu_custom_call.1} parent=23 // pred_region
          %s268 = smul.u32 2, %s23
          %p269 = scmp.lt.s32.totalorder %s22, 1
          %s270 = scalar_select %p269, %s22, 1
          %p271 = scmp.lt.s32.totalorder %s268, 1
          %s272 = scalar_select %p271, %s268, 1
          %s273 = smul.addr %s270, 2
          %s274 = sadd.s32 %s272, %s273
          %s275 = smul.addr %s274, 8
          %s276 = scalar_lea.vmem %s5, %s275
          %s277 = smul.u32 2, %s23
        $region40: #{tpu_custom_call.1} parent=23 // pred_fallthru
          _
      $region24: #{tpu_custom_call.1} parent=5 // pred_fallthru
        _
      %p278 = scmp.le.s32.totalorder 1, %s15
      %p279 = scmp.lt.s32.totalorder %s15, 3
      %p280 = pnand %p278, %p279
      %p281 = pneg %p280
      // Predicated region
      $region41: #{tpu_custom_call.1} parent=5 // pred_check
        _
      $region42: #{tpu_custom_call.1} parent=5 // pred_check_branch
        %283 = sbr.rel (%p280) target = $region44
      $region43: #{tpu_custom_call.1} parent=5 // pred_region
        %s284 = ssub.s32 %s15, 1
        %s285 = smul.u32 2, %s25
        %p286 = scmp.lt.s32.totalorder %s24, 1
        %s287 = scalar_select %p286, %s24, 1
        %p288 = scmp.lt.s32.totalorder %s285, 1
        %s289 = scalar_select %p288, %s285, 1
        %s290 = smul.addr %s287, 2
        %s291 = sadd.s32 %s289, %s290
        %s292 = smul.addr %s291, 8
        %s293 = scalar_lea.vmem %s0, %s292
        %p294 = pneg %p55
        %p295 = pneg %p52
        %p296 = scmp.lt.s32.totalorder %s24, 1
        %s297 = scalar_select %p296, %s24, 1
        %p298 = scmp.lt.s32.totalorder %s25, 0
        %s299 = scalar_select %p298, %s25, 0
        %s300 = sadd.s32 %s299, %s297
        %s301 = scalar_lea.vmem %s1, %s300
        %p302 = pneg %p83
        %p303 = pneg %p80
        %p304 = scmp.lt.s32.totalorder %s24, 1
        %s305 = scalar_select %p304, %s24, 1
        %p306 = scmp.lt.s32.totalorder %s25, 0
        %s307 = scalar_select %p306, %s25, 0
        %s308 = sadd.s32 %s307, %s305
        %s309 = scalar_lea.vmem %s2, %s308
        %p310 = pneg %p111
        %p311 = pneg %p108
        %p312 = pneg %p132
        %p313 = pneg %p129
        %p314 = pneg %p153
        %p315 = pneg %p150
        %s316 = smul.u32 2, %s25
        %p317 = scmp.lt.s32.totalorder %s24, 1
        %s318 = scalar_select %p317, %s24, 1
        %p319 = scmp.lt.s32.totalorder %s316, 1
        %s320 = scalar_select %p319, %s316, 1
        %s321 = smul.addr %s318, 2
        %s322 = sadd.s32 %s320, %s321
        %s323 = smul.addr %s322, 8
        %s324 = scalar_lea.vmem %s5, %s323
        %p325 = pneg %p181
        %p326 = pneg %p178
        %p327 = pneg %p209
        %p328 = pneg %p206
        %s329 = sand.u32 %s196, 1
        %s330 = scalar_lea.sflag [#allocation5], %s329
        %s331 = sand.u32 %s196, 1
        %s332 = smul.addr %s331, 16
        %s333 = scalar_lea.vmem [#allocation4], %s332
        %s334 = smul.u32 2, %s25
        %p335 = scmp.lt.s32.totalorder %s24, 1
        %s336 = scalar_select %p335, %s24, 1
        %p337 = scmp.lt.s32.totalorder %s334, 1
        %s338 = scalar_select %p337, %s334, 1
        %s339 = smul.addr %s336, 2
        %s340 = sadd.s32 %s338, %s339
        %s341 = smul.addr %s340, 8
        %s342 = scalar_lea.vmem %s0, %s341
        %s343 = smul.u32 2, %s25
        %p344 = scmp.lt.s32.totalorder %s24, 1
        %s345 = scalar_select %p344, %s24, 1
        %p346 = scmp.lt.s32.totalorder %s25, 0
        %s347 = scalar_select %p346, %s25, 0
        %s348 = sadd.s32 %s347, %s345
        %s349 = scalar_lea.vmem %s1, %s348
        %p350 = scmp.lt.s32.totalorder %s24, 1
        %s351 = scalar_select %p350, %s24, 1
        %p352 = scmp.lt.s32.totalorder %s25, 0
        %s353 = scalar_select %p352, %s25, 0
        %s354 = sadd.s32 %s353, %s351
        %s355 = scalar_lea.vmem %s2, %s354
        %s356 = smul.u32 2, %s25
        %p357 = scmp.lt.s32.totalorder %s24, 1
        %s358 = scalar_select %p357, %s24, 1
        %p359 = scmp.lt.s32.totalorder %s356, 1
        %s360 = scalar_select %p359, %s356, 1
        %s361 = smul.addr %s358, 2
        %s362 = sadd.s32 %s360, %s361
        %s363 = smul.addr %s362, 8
        %s364 = scalar_lea.vmem %s5, %s363
        %s365 = smul.u32 2, %s25
        %s366 = smul.u32 2, %s25
        %v368 = vld [vmem:[%s342] sm:$0xff]
        %v369 = vld [vmem:[%s342 + $0x8] sm:$0xff]
        %v370 = vpack.c.bf16 %v369, %v368
        %v372 = vunpack.c.l.b16 %v370
        %v373 = vunpack.c.h.b16 %v370
        %v374 = vpack.c.b16 %v372, %v372
        %v375 = vpack.c.b16 %v373, %v373
        %vm378 = vcmask 257024
        %379 = vst.msk [vmem:[#allocation2 + $0x8] sm:$0xf] %vm378, %v374
        %380 = vst.msk [vmem:[#allocation2 + $0xc] sm:$0xf] %vm378, %v375
        %v381 = vld [vmem:[%s349] sm:$0x1]
        %v384 = vunpack.c.l.s4 1935823168
        %v385 = vunpack.c.0.s8 %v384
        %v386 = vlaneseq
        %v387 = vshrl.u32 %v386, 7
        %v388 = vsub.s32 %v385, %v387
        %v389 = vrot.slane %v381, %v388
        %v391 = vunpack.c.l.s4 1935823168
        %v392 = vunpack.c.0.s8 %v391
        %v393 = vlaneseq
        %v394 = vshrl.u32 %v393, 7
        %v395 = vsub.s32 %v392, %v394
        %v396 = vrot.slane %v389, %v395
        %v398 = vshll.u32 %v396, 16
        %v400 = vrot.slane %v398, 5
        %vm402 = vcmask 257027
        %vm403 = vsmask.f32 7950
        %vm404 = vmand %vm402, %vm403
        %v405 = vld [vmem:[#allocation2 + $0x4] sm:$0x8]
        %v406 = vsel %vm404, %v400, %v405
        %407 = vst [vmem:[#allocation2 + $0x4] sm:$0x8] %v406
        %v408 = vld [vmem:[%s355] sm:$0x1]
        %vm409 = vcmask 253952
        %vm410 = vsmask.f32 256
        %vm411 = vmand %vm409, %vm410
        %v412 = vld [vmem:[#allocation2 + $0x10] sm:$0x1]
        %v413 = vsel %vm411, %v408, %v412
        %414 = vst [vmem:[#allocation2 + $0x10] sm:$0x1] %v413
        %v415 = vld [vmem:[#allocation2 + $0x4] sm:$0x8]
        %v416 = vld [vmem:[#allocation2 + $0x8] sm:$0xf]
        %v417 = vld [vmem:[#allocation2 + $0xc] sm:$0xf]
        %vm418 = vsmask.f32 4368
        %vm419 = vmor %vm410, %vm418
        %v421 = vshrl.u32 %v415, 16
        %v423 = vrot.slane %v421, 7
        %v424 = vrot.slane %v423, 4
        %v426 = vshrl.u32 %v416, 16
        %v428 = vrot.slane %v426, 7
        %v429 = vshll.u32 %v416, 16
        %v431 = vor.u32 %v428, %v429
        %v432 = vsel %vm419, %v424, %v431
        %v433 = vrot.slane %v428, 4
        %v435 = vshrl.u32 %v417, 16
        %v437 = vrot.slane %v435, 7
        %v438 = vshll.u32 %v417, 16
        %v440 = vor.u32 %v437, %v438
        %v441 = vsel %vm419, %v433, %v440
        %444 = vst.msk [vmem:[#allocation3] sm:$0xf] %vm378, %v432
        %445 = vst.msk [vmem:[#allocation3 + $0x4] sm:$0xf] %vm378, %v441
        %v446 = vld [vmem:[#allocation2 + $0x8] sm:$0xf]
        %v447 = vld [vmem:[#allocation2 + $0xc] sm:$0xf]
        %450 = vrot.lane.b32.xlu0 %v446, 32
        %v451 = vpop.permute.xlu0 %450
        %452 = vrot.lane.b32.xlu0 %v447, 32
        %v453 = vpop.permute.xlu0 %452
        %vm456 = vcmask 519424
        %457 = vst.msk [vmem:[#allocation3] sm:$0xf] %vm456, %v451
        %458 = vst.msk [vmem:[#allocation3 + $0x4] sm:$0xf] %vm456, %v453
        %v459 = vld [vmem:[#allocation2 + $0x8] sm:$0xf]
        %v460 = vld [vmem:[#allocation2 + $0xc] sm:$0xf]
        %v461 = vld [vmem:[#allocation2 + $0x10] sm:$0x1]
        %vm462 = vsmask.f32 3328
        %vm463 = vsmask.f32 7440
        %vm464 = vmor %vm462, %vm463
        %v466 = vshrl.u32 %v459, 16
        %v468 = vrot.slane %v466, 4
        %v469 = vshll.u32 %v459, 16
        %v471 = vrot.slane %v469, 5
        %v472 = vor.u32 %v468, %v471
        %v473 = vrot.slane %v472, 4
        %v475 = vshll.u32 %v460, 16
        %v477 = vrot.slane %v475, 5
        %v478 = vsel %vm464, %v473, %v477
        %v479 = vshrl.u32 %v460, 16
        %v481 = vrot.slane %v479, 4
        %v482 = vor.u32 %v481, %v477
        %v483 = vrot.slane %v482, 4
        %v485 = vshll.u32 %v461, 16
        %v487 = vrot.slane %v485, 5
        %v488 = vsel %vm464, %v483, %v487
        %489 = vrot.lane.b32.xlu0 %v478, 64
        %v490 = vpop.permute.xlu0 %489
        %491 = vrot.lane.b32.xlu0 %v488, 64
        %v492 = vpop.permute.xlu0 %491
        %vm495 = vcmask 781824
        %496 = vst.msk [vmem:[#allocation3] sm:$0xf] %vm495, %v490
        %497 = vst.msk [vmem:[#allocation3 + $0x4] sm:$0xf] %vm495, %v492
        %v498 = vld [vmem:[#allocation3] sm:$0xf]
        %v499 = vld [vmem:[#allocation3 + $0x4] sm:$0xf]
        %v500 = vld [vmem:[%s3] sm:$0xf]
        %v501 = vld [vmem:[%s3 + $0x4] sm:$0xf]
        %v502 = vld [vmem:[%s3 + $0x8] sm:$0xf]
        %v503 = vld [vmem:[%s3 + $0xc] sm:$0xf]
        %v504 = vld [vmem:[%s3 + $0x10] sm:$0xf]
        %v505 = vld [vmem:[%s3 + $0x14] sm:$0xf]
        %v506 = vld [vmem:[%s3 + $0x18] sm:$0xf]
        %v507 = vld [vmem:[%s3 + $0x1c] sm:$0xf]
        %v508 = vld [vmem:[%s3 + $0x20] sm:$0xf]
        %v509 = vld [vmem:[%s3 + $0x24] sm:$0xf]
        %v510 = vld [vmem:[%s3 + $0x28] sm:$0xf]
        %v511 = vld [vmem:[%s3 + $0x2c] sm:$0xf]
        %v512 = vld [vmem:[%s4] sm:$0x1]
        %v514 = vlaneseq
        %v515 = vshrl.u32 %v514, 7
        %v516 = vsub.s32 0, %v515
        %v517 = vrot.slane %v512, %v516
        %v521 = vunpack.c.l.b16 %v498
        %v522 = vunpack.c.l.b16 %v499
        %v523 = vpack.c.b16 %v522, %v521
        %v536 = vunpack.c.l.b16 %v500
        %v537 = vunpack.c.l.b16 %v501
        %v538 = vunpack.c.l.b16 %v502
        %v539 = vunpack.c.l.b16 %v503
        %v540 = vunpack.c.l.b16 %v504
        %v541 = vunpack.c.l.b16 %v505
        %v542 = vunpack.c.l.b16 %v506
        %v543 = vunpack.c.l.b16 %v507
        %v544 = vunpack.c.l.b16 %v508
        %v545 = vunpack.c.l.b16 %v509
        %v546 = vunpack.c.l.b16 %v510
        %v547 = vunpack.c.l.b16 %v511
        %v548 = vpack.c.b16 %v537, %v536
        %v549 = vpack.c.b16 %v539, %v538
        %v550 = vpack.c.b16 %v541, %v540
        %v551 = vpack.c.b16 %v543, %v542
        %v552 = vpack.c.b16 %v545, %v544
        %v553 = vpack.c.b16 %v547, %v546
        %vm560 = vcmask 785408
        %v562 = vsel %vm560, %v523, 0
        %564 = vmatprep.subr.bf16.mxu0 0
        %565 = vmatpush1.bf16.msra.mxu0 0
        %566 = vmatprep.subr.bf16.mxu0 0
        %567 = vmatpush1.bf16.msra.mxu0 0
        %568 = vmatprep.subr.bf16.mxu0 0
        %569 = vmatpush1.bf16.msra.mxu0 %v553
        %570 = vmatprep.subr.bf16.mxu0 0
        %571 = vmatpush1.bf16.msra.mxu0 %v552
        %572 = vmatprep.subr.bf16.mxu0 0
        %573 = vmatpush1.bf16.msra.mxu0 %v551
        %574 = vmatprep.subr.bf16.mxu0 0
        %575 = vmatpush1.bf16.msra.mxu0 %v550
        %576 = vmatprep.subr.bf16.mxu0 0
        %577 = vmatpush1.bf16.msra.mxu0 %v549
        %578 = vmatprep.subr.bf16.mxu0 0
        %579 = vmatpush1.bf16.msra.mxu0 %v548
        %580 = vmatprep.subr.bf16.mxu0 0
        %581 = vmatpush2.bf16.msra.mxu0 0
        %582 = vmatprep.subr.bf16.mxu0 0
        %583 = vmatpush2.bf16.msra.mxu0 0
        %584 = vmatprep.subr.bf16.mxu0 0
        %585 = vmatpush2.bf16.msra.mxu0 0
        %586 = vmatprep.subr.bf16.mxu0 0
        %587 = vmatpush2.bf16.msra.mxu0 0
        %588 = vmatprep.subr.bf16.mxu0 0
        %589 = vmatpush2.bf16.msra.mxu0 0
        %590 = vmatprep.subr.bf16.mxu0 0
        %591 = vmatpush2.bf16.msra.mxu0 0
        %592 = vmatprep.subr.bf16.mxu0 0
        %593 = vmatpush2.bf16.msra.mxu0 0
        %594 = vmatprep.subr.bf16.mxu0 0
        %595 = vmatpush2.bf16.msra.mxu0 0
        %596 = vmatprep.mubr.bf16.mxu0 0
        %597 = vmatmul.mubr.bf16.gmra.mxu0 %v562
        %v598 = vpop.f32.mrf.mxu0
        %v599 = vadd.f32 %v517, %v598
        %v600 = vpop.f32.mrf.mxu0
        %v601 = vpop.f32.mrf.mxu0
        %v602 = vadd.f32 %v517, %v601
        %v603 = vpop.f32.mrf.mxu0
        %604 = vdwg.mxu0
        %v605 = vmax.f32 %v599, 0.0
        %v606 = vmax.f32 %v602, 0.0
        %v607 = vld [vmem:[%s364] sm:$0xff]
        %v608 = vld [vmem:[%s364 + $0x8] sm:$0xff]
        %610 = vset.pattern.permute.xlu0 0
        %611 = vperm.xlu0 %610, %v607
        %v612 = vpop.permute.xlu0 %611
        %615 = vset.pattern.permute.xlu0 0
        %616 = vperm.xlu0 %615, %v608
        %v617 = vpop.permute.xlu0 %616
        %v619 = vmul.f32 %v605, %v612
        %v620 = vmul.f32 %v606, %v617
        %vm621 = vcmask 261120
        %622 = vst.msk [vmem:[%s333] sm:$0xff] %vm621, %v619
        %623 = vst.msk [vmem:[%s333 + $0x8] sm:$0xff] %vm621, %v620
        %s624 = sand.u32 %s196, 1
        %s625 = scalar_lea.sflag [#allocation5], %s624
        %s626 = sand.u32 %s196, 1
        %s627 = smul.addr %s626, 16
        %s628 = scalar_lea.vmem [#allocation4], %s627
        // Predicated region
        $region45: #{tpu_custom_call.1} parent=43 // pred_check
          %p629 = pneg %p206
        $region46: #{tpu_custom_call.1} parent=43 // pred_check_branch
          %631 = sbr.rel (%p629) target = $region48
        $region47: #{tpu_custom_call.1} parent=43 // pred_region
          %s632 = smul.u32 2, %s25
          %s634 = ssub.s32 256, 256
          %635 = vsyncadd %s625, %s634
          %s636 = smul.addr %s24, 2
          %s637 = sadd.s32 %s632, %s636
          %s638 = smul.addr %s637, 128
          %s639 = scalar_lea.hbm %s6, %s638
          %s640 = sshll.u32 %s628, 4
          %s641 = int_to_ptr.vmem [resolvable:$true] %s640
          %646 = dma.vmem_to_hbm [thread:$0]  %s641, 256, %s639, %s625, 128, 128, 8
        $region48: #{tpu_custom_call.1} parent=43 // pred_fallthru
          _
      $region44: #{tpu_custom_call.1} parent=5 // pred_fallthru
        _
      %p647 = scmp.le.s32.totalorder 2, %s15
      // Predicated region
      $region49: #{tpu_custom_call.1} parent=5 // pred_check
        %p648 = pneg %p647
      $region50: #{tpu_custom_call.1} parent=5 // pred_check_branch
        %650 = sbr.rel (%p648) target = $region52
      $region51: #{tpu_custom_call.1} parent=5 // pred_region
        %s651 = ssub.s32 %s15, 2
        // Predicated region
        $region53: #{tpu_custom_call.1} parent=51 // pred_check
          %p652 = pneg %p212
        $region54: #{tpu_custom_call.1} parent=51 // pred_check_branch
          %654 = sbr.rel (%p652) target = $region56
        $region55: #{tpu_custom_call.1} parent=51 // pred_region
          %s655 = sand.u32 %s197, 1
          %s656 = scalar_lea.sflag [#allocation5], %s655
          %s657 = sand.u32 %s197, 1
          %s658 = smul.addr %s657, 16
          %s659 = scalar_lea.vmem [#allocation4], %s658
          %660 = dma.done %s656, 256
        $region56: #{tpu_custom_call.1} parent=51 // pred_fallthru
          _
      $region52: #{tpu_custom_call.1} parent=5 // pred_fallthru
        _
    $region6: #{tpu_custom_call.1} parent=1 // loop_footer
      %s19 = sadd.s32 1, %s15
    $region7: #{tpu_custom_call.1} parent=1 // loop_footer_branch
      %14 = sbr.rel target = $region3
    $region8: #{tpu_custom_call.1} parent=1 // loop_exit
      _
    %661 = vsyncpa [#allocation5], 1
    %s662 = scalar_lea.sflag [#allocation5], 1
    %663 = vsyncpa %s662, 1

</llo_original>
